<compile_context>
chip_gen: v7x
topology: tpu7x:2x2x1
jax: 0.10.0
libtpu: 0.0.40
codegen_flags: <defaults>
</compile_context>

<pallas_src>
import functools

import jax
import jax.numpy as jnp
from jax.experimental import pallas as pl
from jax.experimental.pallas import tpu as pltpu


def _gat_kernel(adj_ref, src_ref, dst_ref, res_ref, hv_ref, bias_ref,
                o_ref, acc_ref, *, num_heads, out_feats, neg_slope, thred):
    """One (batch, row-tile) step of GATConv attention + aggregation.

    adj_ref : [1, tq, N] f32        raw adjacency slab (thresholded in-kernel)
    src_ref : [1, tq, H] f32        per-row source scores
    dst_ref : [1, H, N]  f32        per-key target scores (already [H, N])
    res_ref : [1, tq, HF] f32       residual projection of the query rows
    hv_ref  : [1, N, H*(F+1)] f32   per-head value slices with a ones column
    bias_ref: [1, HF]
    o_ref   : [1, tq, HF]
    acc_ref : [tq, HF] f32 VMEM scratch
    """
    H, F = num_heads, out_feats
    Fp1 = F + 1
    NEG = jnp.float32(-1e30)

    src = src_ref[0]                                      # [tq, H]
    dst = dst_ref[0]                                      # [H, N]
    hv = hv_ref[0]                                        # [N, H*(F+1)]

    # Additive connectivity mask, computed once (shared by all heads).
    mask_add = jnp.where(adj_ref[0] < thred, NEG, jnp.float32(0.0))  # [tq, N]

    for k in range(H):
        s = src[:, k:k + 1] + dst[k:k + 1, :]             # [tq, N]
        s = jnp.where(s > 0, s, neg_slope * s)            # LeakyReLU
        s = s + mask_add                                  # finite masking
        m = jnp.max(s, axis=-1, keepdims=True)            # [tq, 1]
        e = jnp.exp(s - m)                                # [tq, N]
        # Aggregation + denominator in one MXU call (ones column is "free"
        # because the output width F+1 is far below the lane count anyway).
        agg = jnp.dot(e, hv[:, k * Fp1:(k + 1) * Fp1],
                      preferred_element_type=jnp.float32)  # [tq, F+1]
        denom = agg[:, F:F + 1]                            # [tq, 1] == sum(e)
        acc_ref[:, k * F:(k + 1) * F] = agg[:, :F] / denom  # exact f32 division

    out = acc_ref[...] + res_ref[0] + bias_ref[...]
    # ELU (alpha = 1), NaN-safe via clamped exp argument.
    out = jnp.where(out > 0, out, jnp.exp(jnp.minimum(out, 0.0)) - 1.0)
    o_ref[0] = out.astype(o_ref.dtype)


def gat_conv(adj, x, w_lin, s_src, s_dst, w_res, bias, *, num_heads, out_feats,
             thred, neg_slope=0.2, row_tile=None):
    B, N, Cin = x.shape
    H, F = num_heads, out_feats
    HF = H * F

    # Row (query-node) tile: bounds per-step VMEM to O(tq * N) and gives a
    # second parallel grid axis even when B == 1.
    if row_tile is None:
        row_tile = N if (N <= 128 or N % 128 != 0) else 128
    assert N % row_tile == 0, "row_tile must divide N"
    R = N // row_tile

    # ---- per-batch projections, hoisted out of the row-tile grid ----------
    # (plain XLA matmuls, executed once; the kernel only does attention math)
    h = jnp.einsum('bnc,cf->bnf', x, w_lin)               # [B, N, HF]
    h4 = h.reshape(B, N, H, F)
    src = jnp.einsum('bnhf,hf->bnh', h4, s_src)           # [B, N, H]
    dst = jnp.einsum('bnhf,hf->bnh', h4, s_dst)           # [B, N, H]
    dst_t = jnp.transpose(dst, (0, 2, 1))                 # [B, H, N]
    res = jnp.einsum('bnc,cf->bnf', x, w_res)             # [B, N, HF]
    # Per-head value slices augmented with a ones column -> denominator comes
    # out of the aggregation matmul for free.
    ones = jnp.ones((B, N, H, 1), h.dtype)
    hv = jnp.concatenate([h4, ones], axis=-1).reshape(B, N, H * (F + 1))
    bias2 = bias.reshape(1, HF)

    kernel = functools.partial(_gat_kernel, num_heads=H, out_feats=F,
                               neg_slope=neg_slope, thred=thred)

    return pl.pallas_call(
        kernel,
        out_shape=jax.ShapeDtypeStruct((B, N, HF), jnp.float32),
        grid_spec=pltpu.PrefetchScalarGridSpec(
            num_scalar_prefetch=0,
            grid=(B, R),
            in_specs=[
                pl.BlockSpec((1, row_tile, N), lambda b, r: (b, r, 0)),        # adj
                pl.BlockSpec((1, row_tile, H), lambda b, r: (b, r, 0)),        # src
                pl.BlockSpec((1, H, N), lambda b, r: (b, 0, 0)),               # dst
                pl.BlockSpec((1, row_tile, HF), lambda b, r: (b, r, 0)),       # res
                pl.BlockSpec((1, N, H * (F + 1)), lambda b, r: (b, 0, 0)),     # values
                pl.BlockSpec((1, HF), lambda b, r: (0, 0)),                    # bias
            ],
            out_specs=pl.BlockSpec((1, row_tile, HF), lambda b, r: (b, r, 0)),
            scratch_shapes=[pltpu.VMEM((row_tile, HF), jnp.float32)],
        ),
        compiler_params=pltpu.CompilerParams(
            dimension_semantics=("parallel", "parallel")),
    )(adj, src, dst_t, res, hv, bias2)


def _reference(adj, x, w_lin, s_src, s_dst, w_res, bias, *, num_heads,
               out_feats, thred, neg_slope=0.2):
    B, N, _ = x.shape
    H, F = num_heads, out_feats
    h = (x @ w_lin).reshape(B, N, H, F)
    src = jnp.sum(h * s_src[None, None], -1)              # [B, N, H]
    dst = jnp.sum(h * s_dst[None, None], -1)              # [B, N, H]
    scores = (jnp.transpose(src, (0, 2, 1))[:, :, :, None] +
              jnp.transpose(dst, (0, 2, 1))[:, :, None, :])   # [B, H, N, N]
    scores = jnp.where(scores > 0, scores, neg_slope * scores)
    mask = jnp.where(adj < thred, -jnp.inf, 0.0)[:, None]
    att = jax.nn.softmax(scores + mask, axis=-1)
    out = jnp.einsum('bhij,bjhf->bihf', att, h).reshape(B, N, H * F)
    out = out + x @ w_res + bias
    return jnp.where(out > 0, out, jnp.exp(jnp.minimum(out, 0.0)) - 1.0)


if __name__ == "__main__":
    # Small, deterministic configuration
    B, N, Cin = 2, 16, 16
    H, F = 4, 8          # num_heads, out_feats (H*F = 32 != Cin -> res_proj Linear)
    thred = 0.5

    key = jax.random.PRNGKey(0)
    k_adj, k_x, k_wl, k_ss, k_st, k_wr = jax.random.split(key, 6)

    adj = jax.random.uniform(k_adj, (B, N, N), jnp.float32)
    x = jax.random.normal(k_x, (B, N, Cin), jnp.float32)

    def xavier(k, shape, fan_in, fan_out):
        bound = (6.0 / (fan_in + fan_out)) ** 0.5
        return jax.random.uniform(k, shape, jnp.float32, -bound, bound)

    HF = H * F
    # nn.Linear(in_feats, H*F).weight is [H*F, Cin]; we store its transpose.
    w_lin = xavier(k_wl, (Cin, HF), fan_in=Cin, fan_out=HF)
    s_src = xavier(k_ss, (H, F), fan_in=H * F, fan_out=F)    # scoring_fn_source
    s_dst = xavier(k_st, (H, F), fan_in=H * F, fan_out=F)    # scoring_fn_target
    w_res = xavier(k_wr, (Cin, HF), fan_in=Cin, fan_out=HF)  # res_proj (transposed)
    bias = jnp.zeros((HF,), jnp.float32)

    out = gat_conv(adj, x, w_lin, s_src, s_dst, w_res, bias,
                   num_heads=H, out_feats=F, thred=thred)
    out = jax.block_until_ready(out)

    ref = _reference(adj, x, w_lin, s_src, s_dst, w_res, bias,
                     num_heads=H, out_feats=F, thred=thred)
    assert out.shape == (B, N, HF)
    assert jnp.allclose(out, ref, atol=1e-3, rtol=1e-3), \
        f"max err {jnp.max(jnp.abs(out - ref))}"

    print("KERNEL_OK")
</pallas_src>

<mosaic_0001>
module attributes {stable_mosaic.version = 11 : i64} {
  func.func @_gat_kernel(%arg0: i32, %arg1: i32, %arg2: memref<1x16x16xf32, #tpu.memory_space<vmem>>, %arg3: memref<1x16x4xf32, #tpu.memory_space<vmem>>, %arg4: memref<1x4x16xf32, #tpu.memory_space<vmem>>, %arg5: memref<1x16x32xf32, #tpu.memory_space<vmem>>, %arg6: memref<1x16x36xf32, #tpu.memory_space<vmem>>, %arg7: memref<1x32xf32, #tpu.memory_space<vmem>>, %arg8: memref<1x16x32xf32, #tpu.memory_space<vmem>>, %arg9: memref<16x32xf32, #tpu.memory_space<vmem>>) attributes {dimension_semantics = [#tpu.dimension_semantics<parallel>, #tpu.dimension_semantics<parallel>], iteration_bounds = array<i64: 2, 1>, scalar_prefetch = 0 : i64, scratch_operands = 1 : i64, tpu.core_type = #tpu.core_type<tc>, window_params = [{transform_indices = @transform_0, window_bounds = array<i64: 1, 16, 16>}, {transform_indices = @transform_1, window_bounds = array<i64: 1, 16, 4>}, {transform_indices = @transform_2, window_bounds = array<i64: 1, 4, 16>}, {transform_indices = @transform_3, window_bounds = array<i64: 1, 16, 32>}, {transform_indices = @transform_4, window_bounds = array<i64: 1, 16, 36>}, {pipeline_mode = #tpu.pipeline_mode<synchronous>, transform_indices = @transform_5, window_bounds = array<i64: 1, 32>}, {transform_indices = @transform_6, window_bounds = array<i64: 1, 16, 32>}]} {
    %c0 = arith.constant 0 : index
    %c0_0 = arith.constant 0 : index
    %c0_1 = arith.constant 0 : index
    %0 = vector.load %arg3[%c0, %c0_0, %c0_1] : memref<1x16x4xf32, #tpu.memory_space<vmem>>, vector<1x16x4xf32>
    %1 = vector.shape_cast %0 : vector<1x16x4xf32> to vector<16x4xf32>
    %c0_2 = arith.constant 0 : index
    %c0_3 = arith.constant 0 : index
    %c0_4 = arith.constant 0 : index
    %2 = vector.load %arg4[%c0_2, %c0_3, %c0_4] : memref<1x4x16xf32, #tpu.memory_space<vmem>>, vector<1x4x16xf32>
    %3 = vector.shape_cast %2 : vector<1x4x16xf32> to vector<4x16xf32>
    %c0_5 = arith.constant 0 : index
    %c0_6 = arith.constant 0 : index
    %c0_7 = arith.constant 0 : index
    %4 = vector.load %arg6[%c0_5, %c0_6, %c0_7] : memref<1x16x36xf32, #tpu.memory_space<vmem>>, vector<1x16x36xf32>
    %5 = vector.shape_cast %4 : vector<1x16x36xf32> to vector<16x36xf32>
    %c0_8 = arith.constant 0 : index
    %c0_9 = arith.constant 0 : index
    %c0_10 = arith.constant 0 : index
    %6 = vector.load %arg2[%c0_8, %c0_9, %c0_10] : memref<1x16x16xf32, #tpu.memory_space<vmem>>, vector<1x16x16xf32>
    %7 = vector.shape_cast %6 : vector<1x16x16xf32> to vector<16x16xf32>
    %cst = arith.constant 5.000000e-01 : f32
    %8 = vector.broadcast %cst : f32 to vector<16x16xf32>
    %9 = arith.cmpf olt, %7, %8 : vector<16x16xf32>
    %cst_11 = arith.constant -1.000000e+30 : f32
    %cst_12 = arith.constant 0.000000e+00 : f32
    %10 = vector.broadcast %cst_11 : f32 to vector<16x16xf32>
    %11 = vector.broadcast %cst_12 : f32 to vector<16x16xf32>
    %12 = arith.select %9, %10, %11 : vector<16x16xi1>, vector<16x16xf32>
    %13 = vector.extract_strided_slice %1 {offsets = [0, 0], sizes = [16, 1], strides = [1, 1]} : vector<16x4xf32> to vector<16x1xf32>
    %14 = vector.extract_strided_slice %3 {offsets = [0, 0], sizes = [1, 16], strides = [1, 1]} : vector<4x16xf32> to vector<1x16xf32>
    %15 = vector.broadcast %13 : vector<16x1xf32> to vector<16x16xf32>
    %16 = vector.broadcast %14 : vector<1x16xf32> to vector<16x16xf32>
    %17 = arith.addf %15, %16 : vector<16x16xf32>
    %cst_13 = arith.constant 0.000000e+00 : f32
    %18 = vector.broadcast %cst_13 : f32 to vector<16x16xf32>
    %19 = arith.cmpf ogt, %17, %18 : vector<16x16xf32>
    %cst_14 = arith.constant 2.000000e-01 : f32
    %20 = vector.broadcast %cst_14 : f32 to vector<16x16xf32>
    %21 = arith.mulf %20, %17 : vector<16x16xf32>
    %22 = arith.select %19, %17, %21 : vector<16x16xi1>, vector<16x16xf32>
    %23 = arith.addf %22, %12 : vector<16x16xf32>
    %cst_15 = arith.constant dense<0xFF800000> : vector<16xf32>
    %24 = vector.multi_reduction <maximumf>, %23, %cst_15 [1] : vector<16x16xf32> to vector<16xf32>
    %25 = vector.shape_cast %24 : vector<16xf32> to vector<16x1xf32>
    %26 = vector.broadcast %25 : vector<16x1xf32> to vector<16x16xf32>
    %27 = arith.subf %23, %26 : vector<16x16xf32>
    %28 = math.exp %27 : vector<16x16xf32>
    %29 = vector.extract_strided_slice %5 {offsets = [0, 0], sizes = [16, 9], strides = [1, 1]} : vector<16x36xf32> to vector<16x9xf32>
    %cst_16 = arith.constant dense<0.000000e+00> : vector<16x9xf32>
    %30 = tpu.matmul %28, %29, %cst_16 {dimension_numbers = #tpu.dot_dimension_numbers<[1], [0], [0], [1], [0, 0, 1, 1], [], []>} : vector<16x16xf32>, vector<16x9xf32>, vector<16x9xf32> -> vector<16x9xf32>
    %31 = vector.extract_strided_slice %30 {offsets = [0, 8], sizes = [16, 1], strides = [1, 1]} : vector<16x9xf32> to vector<16x1xf32>
    %32 = vector.extract_strided_slice %30 {offsets = [0, 0], sizes = [16, 8], strides = [1, 1]} : vector<16x9xf32> to vector<16x8xf32>
    %33 = vector.broadcast %31 : vector<16x1xf32> to vector<16x8xf32>
    %34 = arith.divf %32, %33 : vector<16x8xf32>
    %c0_17 = arith.constant 0 : index
    %c0_18 = arith.constant 0 : index
    %35 = vector.load %arg9[%c0_17, %c0_18] : memref<16x32xf32, #tpu.memory_space<vmem>>, vector<16x8xf32>
    tpu.vector_store %arg9[%c0_17, %c0_18], %34 {strides = array<i32>} : memref<16x32xf32, #tpu.memory_space<vmem>>, vector<16x8xf32>,
    %36 = vector.extract_strided_slice %1 {offsets = [0, 1], sizes = [16, 1], strides = [1, 1]} : vector<16x4xf32> to vector<16x1xf32>
    %37 = vector.extract_strided_slice %3 {offsets = [1, 0], sizes = [1, 16], strides = [1, 1]} : vector<4x16xf32> to vector<1x16xf32>
    %38 = vector.broadcast %36 : vector<16x1xf32> to vector<16x16xf32>
    %39 = vector.broadcast %37 : vector<1x16xf32> to vector<16x16xf32>
    %40 = arith.addf %38, %39 : vector<16x16xf32>
    %cst_19 = arith.constant 0.000000e+00 : f32
    %41 = vector.broadcast %cst_19 : f32 to vector<16x16xf32>
    %42 = arith.cmpf ogt, %40, %41 : vector<16x16xf32>
    %cst_20 = arith.constant 2.000000e-01 : f32
    %43 = vector.broadcast %cst_20 : f32 to vector<16x16xf32>
    %44 = arith.mulf %43, %40 : vector<16x16xf32>
    %45 = arith.select %42, %40, %44 : vector<16x16xi1>, vector<16x16xf32>
    %46 = arith.addf %45, %12 : vector<16x16xf32>
    %cst_21 = arith.constant dense<0xFF800000> : vector<16xf32>
    %47 = vector.multi_reduction <maximumf>, %46, %cst_21 [1] : vector<16x16xf32> to vector<16xf32>
    %48 = vector.shape_cast %47 : vector<16xf32> to vector<16x1xf32>
    %49 = vector.broadcast %48 : vector<16x1xf32> to vector<16x16xf32>
    %50 = arith.subf %46, %49 : vector<16x16xf32>
    %51 = math.exp %50 : vector<16x16xf32>
    %52 = vector.extract_strided_slice %5 {offsets = [0, 9], sizes = [16, 9], strides = [1, 1]} : vector<16x36xf32> to vector<16x9xf32>
    %cst_22 = arith.constant dense<0.000000e+00> : vector<16x9xf32>
    %53 = tpu.matmul %51, %52, %cst_22 {dimension_numbers = #tpu.dot_dimension_numbers<[1], [0], [0], [1], [0, 0, 1, 1], [], []>} : vector<16x16xf32>, vector<16x9xf32>, vector<16x9xf32> -> vector<16x9xf32>
    %54 = vector.extract_strided_slice %53 {offsets = [0, 8], sizes = [16, 1], strides = [1, 1]} : vector<16x9xf32> to vector<16x1xf32>
    %55 = vector.extract_strided_slice %53 {offsets = [0, 0], sizes = [16, 8], strides = [1, 1]} : vector<16x9xf32> to vector<16x8xf32>
    %56 = vector.broadcast %54 : vector<16x1xf32> to vector<16x8xf32>
    %57 = arith.divf %55, %56 : vector<16x8xf32>
    %c0_23 = arith.constant 0 : index
    %c8 = arith.constant 8 : index
    %58 = vector.load %arg9[%c0_23, %c8] : memref<16x32xf32, #tpu.memory_space<vmem>>, vector<16x8xf32>
    tpu.vector_store %arg9[%c0_23, %c8], %57 {strides = array<i32>} : memref<16x32xf32, #tpu.memory_space<vmem>>, vector<16x8xf32>,
    %59 = vector.extract_strided_slice %1 {offsets = [0, 2], sizes = [16, 1], strides = [1, 1]} : vector<16x4xf32> to vector<16x1xf32>
    %60 = vector.extract_strided_slice %3 {offsets = [2, 0], sizes = [1, 16], strides = [1, 1]} : vector<4x16xf32> to vector<1x16xf32>
    %61 = vector.broadcast %59 : vector<16x1xf32> to vector<16x16xf32>
    %62 = vector.broadcast %60 : vector<1x16xf32> to vector<16x16xf32>
    %63 = arith.addf %61, %62 : vector<16x16xf32>
    %cst_24 = arith.constant 0.000000e+00 : f32
    %64 = vector.broadcast %cst_24 : f32 to vector<16x16xf32>
    %65 = arith.cmpf ogt, %63, %64 : vector<16x16xf32>
    %cst_25 = arith.constant 2.000000e-01 : f32
    %66 = vector.broadcast %cst_25 : f32 to vector<16x16xf32>
    %67 = arith.mulf %66, %63 : vector<16x16xf32>
    %68 = arith.select %65, %63, %67 : vector<16x16xi1>, vector<16x16xf32>
    %69 = arith.addf %68, %12 : vector<16x16xf32>
    %cst_26 = arith.constant dense<0xFF800000> : vector<16xf32>
    %70 = vector.multi_reduction <maximumf>, %69, %cst_26 [1] : vector<16x16xf32> to vector<16xf32>
    %71 = vector.shape_cast %70 : vector<16xf32> to vector<16x1xf32>
    %72 = vector.broadcast %71 : vector<16x1xf32> to vector<16x16xf32>
    %73 = arith.subf %69, %72 : vector<16x16xf32>
    %74 = math.exp %73 : vector<16x16xf32>
    %75 = vector.extract_strided_slice %5 {offsets = [0, 18], sizes = [16, 9], strides = [1, 1]} : vector<16x36xf32> to vector<16x9xf32>
    %cst_27 = arith.constant dense<0.000000e+00> : vector<16x9xf32>
    %76 = tpu.matmul %74, %75, %cst_27 {dimension_numbers = #tpu.dot_dimension_numbers<[1], [0], [0], [1], [0, 0, 1, 1], [], []>} : vector<16x16xf32>, vector<16x9xf32>, vector<16x9xf32> -> vector<16x9xf32>
    %77 = vector.extract_strided_slice %76 {offsets = [0, 8], sizes = [16, 1], strides = [1, 1]} : vector<16x9xf32> to vector<16x1xf32>
    %78 = vector.extract_strided_slice %76 {offsets = [0, 0], sizes = [16, 8], strides = [1, 1]} : vector<16x9xf32> to vector<16x8xf32>
    %79 = vector.broadcast %77 : vector<16x1xf32> to vector<16x8xf32>
    %80 = arith.divf %78, %79 : vector<16x8xf32>
    %c0_28 = arith.constant 0 : index
    %c16 = arith.constant 16 : index
    %81 = vector.load %arg9[%c0_28, %c16] : memref<16x32xf32, #tpu.memory_space<vmem>>, vector<16x8xf32>
    tpu.vector_store %arg9[%c0_28, %c16], %80 {strides = array<i32>} : memref<16x32xf32, #tpu.memory_space<vmem>>, vector<16x8xf32>,
    %82 = vector.extract_strided_slice %1 {offsets = [0, 3], sizes = [16, 1], strides = [1, 1]} : vector<16x4xf32> to vector<16x1xf32>
    %83 = vector.extract_strided_slice %3 {offsets = [3, 0], sizes = [1, 16], strides = [1, 1]} : vector<4x16xf32> to vector<1x16xf32>
    %84 = vector.broadcast %82 : vector<16x1xf32> to vector<16x16xf32>
    %85 = vector.broadcast %83 : vector<1x16xf32> to vector<16x16xf32>
    %86 = arith.addf %84, %85 : vector<16x16xf32>
    %cst_29 = arith.constant 0.000000e+00 : f32
    %87 = vector.broadcast %cst_29 : f32 to vector<16x16xf32>
    %88 = arith.cmpf ogt, %86, %87 : vector<16x16xf32>
    %cst_30 = arith.constant 2.000000e-01 : f32
    %89 = vector.broadcast %cst_30 : f32 to vector<16x16xf32>
    %90 = arith.mulf %89, %86 : vector<16x16xf32>
    %91 = arith.select %88, %86, %90 : vector<16x16xi1>, vector<16x16xf32>
    %92 = arith.addf %91, %12 : vector<16x16xf32>
    %cst_31 = arith.constant dense<0xFF800000> : vector<16xf32>
    %93 = vector.multi_reduction <maximumf>, %92, %cst_31 [1] : vector<16x16xf32> to vector<16xf32>
    %94 = vector.shape_cast %93 : vector<16xf32> to vector<16x1xf32>
    %95 = vector.broadcast %94 : vector<16x1xf32> to vector<16x16xf32>
    %96 = arith.subf %92, %95 : vector<16x16xf32>
    %97 = math.exp %96 : vector<16x16xf32>
    %98 = vector.extract_strided_slice %5 {offsets = [0, 27], sizes = [16, 9], strides = [1, 1]} : vector<16x36xf32> to vector<16x9xf32>
    %cst_32 = arith.constant dense<0.000000e+00> : vector<16x9xf32>
    %99 = tpu.matmul %97, %98, %cst_32 {dimension_numbers = #tpu.dot_dimension_numbers<[1], [0], [0], [1], [0, 0, 1, 1], [], []>} : vector<16x16xf32>, vector<16x9xf32>, vector<16x9xf32> -> vector<16x9xf32>
    %100 = vector.extract_strided_slice %99 {offsets = [0, 8], sizes = [16, 1], strides = [1, 1]} : vector<16x9xf32> to vector<16x1xf32>
    %101 = vector.extract_strided_slice %99 {offsets = [0, 0], sizes = [16, 8], strides = [1, 1]} : vector<16x9xf32> to vector<16x8xf32>
    %102 = vector.broadcast %100 : vector<16x1xf32> to vector<16x8xf32>
    %103 = arith.divf %101, %102 : vector<16x8xf32>
    %c0_33 = arith.constant 0 : index
    %c24 = arith.constant 24 : index
    %104 = vector.load %arg9[%c0_33, %c24] : memref<16x32xf32, #tpu.memory_space<vmem>>, vector<16x8xf32>
    tpu.vector_store %arg9[%c0_33, %c24], %103 {strides = array<i32>} : memref<16x32xf32, #tpu.memory_space<vmem>>, vector<16x8xf32>,
    %c0_34 = arith.constant 0 : index
    %c0_35 = arith.constant 0 : index
    %105 = vector.load %arg9[%c0_34, %c0_35] : memref<16x32xf32, #tpu.memory_space<vmem>>, vector<16x32xf32>
    %c0_36 = arith.constant 0 : index
    %c0_37 = arith.constant 0 : index
    %c0_38 = arith.constant 0 : index
    %106 = vector.load %arg5[%c0_36, %c0_37, %c0_38] : memref<1x16x32xf32, #tpu.memory_space<vmem>>, vector<1x16x32xf32>
    %107 = vector.shape_cast %106 : vector<1x16x32xf32> to vector<16x32xf32>
    %108 = arith.addf %105, %107 : vector<16x32xf32>
    %c0_39 = arith.constant 0 : index
    %c0_40 = arith.constant 0 : index
    %109 = vector.load %arg7[%c0_39, %c0_40] : memref<1x32xf32, #tpu.memory_space<vmem>>, vector<1x32xf32>
    %110 = vector.broadcast %109 : vector<1x32xf32> to vector<16x32xf32>
    %111 = arith.addf %108, %110 : vector<16x32xf32>
    %cst_41 = arith.constant 0.000000e+00 : f32
    %112 = vector.broadcast %cst_41 : f32 to vector<16x32xf32>
    %113 = arith.cmpf ogt, %111, %112 : vector<16x32xf32>
    %cst_42 = arith.constant 0.000000e+00 : f32
    %114 = vector.broadcast %cst_42 : f32 to vector<16x32xf32>
    %115 = arith.minimumf %111, %114 : vector<16x32xf32>
    %116 = math.exp %115 : vector<16x32xf32>
    %cst_43 = arith.constant 1.000000e+00 : f32
    %117 = vector.broadcast %cst_43 : f32 to vector<16x32xf32>
    %118 = arith.subf %116, %117 : vector<16x32xf32>
    %119 = arith.select %113, %111, %118 : vector<16x32xi1>, vector<16x32xf32>
    %c0_44 = arith.constant 0 : index
    %c0_45 = arith.constant 0 : index
    %c0_46 = arith.constant 0 : index
    %120 = vector.load %arg8[%c0_44, %c0_45, %c0_46] : memref<1x16x32xf32, #tpu.memory_space<vmem>>, vector<1x16x32xf32>
    %121 = vector.shape_cast %120 : vector<1x16x32xf32> to vector<16x32xf32>
    %122 = vector.shape_cast %119 : vector<16x32xf32> to vector<1x16x32xf32>
    tpu.vector_store %arg8[%c0_44, %c0_45, %c0_46], %122 {strides = array<i32>} : memref<1x16x32xf32, #tpu.memory_space<vmem>>, vector<1x16x32xf32>,
    return
  }
  func.func @transform_0(%arg0: i32, %arg1: i32) -> (i32, i32, i32) {
    %c0_i32 = arith.constant 0 : i32
    %c0_i32_0 = arith.constant 0 : i32
    return %arg0, %arg1, %c0_i32 : i32, i32, i32
  }
  func.func @transform_1(%arg0: i32, %arg1: i32) -> (i32, i32, i32) {
    %c0_i32 = arith.constant 0 : i32
    %c0_i32_0 = arith.constant 0 : i32
    return %arg0, %arg1, %c0_i32 : i32, i32, i32
  }
  func.func @transform_2(%arg0: i32, %arg1: i32) -> (i32, i32, i32) {
    %c0_i32 = arith.constant 0 : i32
    %c0_i32_0 = arith.constant 0 : i32
    %c0_i32_1 = arith.constant 0 : i32
    return %arg0, %c0_i32, %c0_i32_0 : i32, i32, i32
  }
  func.func @transform_3(%arg0: i32, %arg1: i32) -> (i32, i32, i32) {
    %c0_i32 = arith.constant 0 : i32
    %c0_i32_0 = arith.constant 0 : i32
    return %arg0, %arg1, %c0_i32 : i32, i32, i32
  }
  func.func @transform_4(%arg0: i32, %arg1: i32) -> (i32, i32, i32) {
    %c0_i32 = arith.constant 0 : i32
    %c0_i32_0 = arith.constant 0 : i32
    %c0_i32_1 = arith.constant 0 : i32
    return %arg0, %c0_i32, %c0_i32_0 : i32, i32, i32
  }
  func.func @transform_5(%arg0: i32, %arg1: i32) -> (i32, i32) {
    %c0_i32 = arith.constant 0 : i32
    %c0_i32_0 = arith.constant 0 : i32
    %c0_i32_1 = arith.constant 0 : i32
    return %c0_i32, %c0_i32_0 : i32, i32
  }
  func.func @transform_6(%arg0: i32, %arg1: i32) -> (i32, i32, i32) {
    %c0_i32 = arith.constant 0 : i32
    %c0_i32_0 = arith.constant 0 : i32
    return %arg0, %arg1, %c0_i32 : i32, i32, i32
  }
}

</mosaic_0001>

<llo_original>
// kernel: tpu_custom_call.1
$region0: #{tpu_custom_call.1}
  #allocation0 [shape = 'u32[]', space=smem, size = 0x4, offset = 0x4, fixed_abs, tag = 'smem constant byte address 0x4 - core index']
  #allocation1 [shape = 'u32[144,128]{1,0:T(1,128)}', space=vmem, size = 0x12000, scoped, tag = 'internal scratch']
  #allocation2 [shape = 'f32[16,32]{1,0:T(8,128)}', space=vmem, size = 0x2000, scoped, tag = 'scratch operand']
  %s0 = inlined_call_operand.vmem [shape: f32[2,16,16], index: 0, kind: input, shape index: {}]
  %s1 = inlined_call_operand.vmem [shape: f32[2,16,4], index: 1, kind: input, shape index: {}]
  %s2 = inlined_call_operand.vmem [shape: f32[2,4,16], index: 2, kind: input, shape index: {}]
  %s3 = inlined_call_operand.hbm [shape: f32[2,16,32], index: 3, kind: input, shape index: {}]
  %s4 = inlined_call_operand.hbm [shape: f32[2,16,36], index: 4, kind: input, shape index: {}]
  %s5 = inlined_call_operand.vmem [shape: f32[1,32], index: 5, kind: input, shape index: {}]
  %s6 = inlined_call_operand.hbm [shape: f32[2,16,32], index: 6, kind: output, shape index: {}]
  %s7 = sld [smem:[#allocation0]]
  $region65: #{tpu_custom_call.1} parent=0
    _
  %s9 = ssub.s32 1, %s7
  %s10 = scalar_select 0, %s9, %s7
  $region1: #{tpu_custom_call.1} parent=0
    #allocation3 [shape = 'u8[16384]{0}', space=vmem, size = 0x4000, scoped, tag = 'input window, operand 3']
    #allocation4 [shape = 's32[2]{0}', space=sflag, size = 0x8, scoped, tag = 'scoped memory for tpu_custom_call.1']
    #allocation5 [shape = 's32[2]{0}', space=sflag, size = 0x8, scoped, tag = 'scoped memory for tpu_custom_call.1']
    #allocation6 [shape = 'u8[16384]{0}', space=vmem, size = 0x4000, scoped, tag = 'input window, operand 4']
    #allocation7 [shape = 's32[2]{0}', space=sflag, size = 0x8, scoped, tag = 'scoped memory for tpu_custom_call.1']
    #allocation8 [shape = 'u8[16384]{0}', space=vmem, size = 0x4000, scoped, tag = 'output window, operand 0']
    %11 = vsyncpa [#allocation4], 0
    %s12 = scalar_lea.sflag [#allocation4], 1
    %13 = vsyncpa %s12, 0
    %14 = vsyncpa [#allocation7], 0
    %s15 = scalar_lea.sflag [#allocation7], 1
    %16 = vsyncpa %s15, 0
    %17 = vsyncpa [#allocation5], 0
    %s18 = scalar_lea.sflag [#allocation5], 1
    %19 = vsyncpa %s18, 0
    loop: start=0, step=1, limit=4
    $region2: #{tpu_custom_call.1} parent=1 // loop_pre_header
      _
    $region3: #{tpu_custom_call.1} parent=1 // loop_header
      %s21 = sphi 0, %s25
      %p22 = scmp.ge.s32.totalorder %s21, 4
      %s28 = sphi 0, %s40
      %s29 = sphi 0, %s36
      %s30 = sphi 0, %s28
      %s31 = sphi 0, %s29
      %s32 = sphi 0, %s30
      %s33 = sphi 0, %s31
      %s45 = sphi 0, %s47
      %s48 = sphi 0, %s45
      %s49 = sphi 0, %s48
      %s65 = sphi 0, %s49
      %s73 = sphi 0, %s75
      %s76 = sphi 0, %s73
      %s77 = sphi 0, %s76
      %s93 = sphi 0, %s77
      %s99 = sphi 0, %s101
      %s102 = sphi 0, %s99
      %s103 = sphi 0, %s102
      %s119 = sphi 0, %s103
      %s127 = sphi 0, %s129
      %s130 = sphi 0, %s127
      %s131 = sphi 0, %s130
      %s147 = sphi 0, %s131
      %s153 = sphi 0, %s155
      %s156 = sphi 0, %s153
      %s157 = sphi 0, %s156
      %s173 = sphi 0, %s157
      %s177 = sphi 0, %s177
      %s179 = sphi 0, %s177
      %s180 = sphi 0, %s179
      %s194 = sphi 0, %s180
      %s202 = sphi 0, %s204
      %s205 = sphi 0, %s202
      %s206 = sphi 0, %s205
      %s222 = sphi 0, %s206
    $region4: #{tpu_custom_call.1} parent=1 // loop_header_branch
      %24 = sbr.rel (%p22) target = $region8
    $region5: #{tpu_custom_call.1} parent=1 // loop_body
      %s26 = ssub.s32 %s21, 1
      %s27 = ssub.s32 %s21, 2
      %s34 = sadd.s32 1, %s29
      %p35 = scmp.ge.s32.totalorder %s34, 1
      %s36 = scalar_select %p35, 0, %s34
      %s37 = sadd.s32 1, %s28
      %s38 = scalar_select %p35, %s37, %s28
      %p39 = scmp.ge.s32.totalorder %s38, 2
      %s40 = scalar_select %p39, 0, %s38
      %s41 = ssub.s32 %s28, %s40
      %s42 = ssub.s32 %s29, %s36
      %s43 = sor.u32 %s41, %s42
      %p44 = scmp.eq.s32.totalorder %s43, 0
      %s46 = sadd.s32 %s45, 1
      %s47 = scalar_select %p44, %s45, %s46
      %p50 = pneg %p44
      %p51 = scmp.eq.s32.totalorder %s21, 1
      %p52 = por %p50, %p51
      %p53 = scmp.ne.s32.totalorder %s45, %s48
      %p54 = scmp.eq.s32.totalorder %s21, 0
      %p55 = por %p53, %p54
      %p56 = scmp.ne.s32.totalorder %s45, %s48
      %p57 = scmp.eq.s32.totalorder %s26, 1
      %p58 = por %p56, %p57
      %p59 = scmp.ne.s32.totalorder %s48, %s49
      %p60 = scmp.eq.s32.totalorder %s26, 0
      %p61 = por %p59, %p60
      %p62 = scmp.ne.s32.totalorder %s48, %s49
      %p63 = scmp.eq.s32.totalorder %s27, 1
      %p64 = por %p62, %p63
      %p66 = scmp.ne.s32.totalorder %s49, %s65
      %p67 = scmp.eq.s32.totalorder %s27, 0
      %p68 = por %p66, %p67
      %s69 = ssub.s32 %s28, %s40
      %s70 = ssub.s32 %s29, %s36
      %s71 = sor.u32 %s69, %s70
      %p72 = scmp.eq.s32.totalorder %s71, 0
      %s74 = sadd.s32 %s73, 1
      %s75 = scalar_select %p72, %s73, %s74
      %p78 = pneg %p72
      %p79 = scmp.eq.s32.totalorder %s21, 1
      %p80 = por %p78, %p79
      %p81 = scmp.ne.s32.totalorder %s73, %s76
      %p82 = scmp.eq.s32.totalorder %s21, 0
      %p83 = por %p81, %p82
      %p84 = scmp.ne.s32.totalorder %s73, %s76
      %p85 = scmp.eq.s32.totalorder %s26, 1
      %p86 = por %p84, %p85
      %p87 = scmp.ne.s32.totalorder %s76, %s77
      %p88 = scmp.eq.s32.totalorder %s26, 0
      %p89 = por %p87, %p88
      %p90 = scmp.ne.s32.totalorder %s76, %s77
      %p91 = scmp.eq.s32.totalorder %s27, 1
      %p92 = por %p90, %p91
      %p94 = scmp.ne.s32.totalorder %s77, %s93
      %p95 = scmp.eq.s32.totalorder %s27, 0
      %p96 = por %p94, %p95
      %s97 = ssub.s32 %s28, %s40
      %p98 = scmp.eq.s32.totalorder %s97, 0
      %s100 = sadd.s32 %s99, 1
      %s101 = scalar_select %p98, %s99, %s100
      %p104 = pneg %p98
      %p105 = scmp.eq.s32.totalorder %s21, 1
      %p106 = por %p104, %p105
      %p107 = scmp.ne.s32.totalorder %s99, %s102
      %p108 = scmp.eq.s32.totalorder %s21, 0
      %p109 = por %p107, %p108
      %p110 = scmp.ne.s32.totalorder %s99, %s102
      %p111 = scmp.eq.s32.totalorder %s26, 1
      %p112 = por %p110, %p111
      %p113 = scmp.ne.s32.totalorder %s102, %s103
      %p114 = scmp.eq.s32.totalorder %s26, 0
      %p115 = por %p113, %p114
      %p116 = scmp.ne.s32.totalorder %s102, %s103
      %p117 = scmp.eq.s32.totalorder %s27, 1
      %p118 = por %p116, %p117
      %p120 = scmp.ne.s32.totalorder %s103, %s119
      %p121 = scmp.eq.s32.totalorder %s27, 0
      %p122 = por %p120, %p121
      %s123 = ssub.s32 %s28, %s40
      %s124 = ssub.s32 %s29, %s36
      %s125 = sor.u32 %s123, %s124
      %p126 = scmp.eq.s32.totalorder %s125, 0
      %s128 = sadd.s32 %s127, 1
      %s129 = scalar_select %p126, %s127, %s128
      %p132 = pneg %p126
      %p133 = scmp.eq.s32.totalorder %s21, 1
      %p134 = por %p132, %p133
      %p135 = scmp.ne.s32.totalorder %s127, %s130
      %p136 = scmp.eq.s32.totalorder %s21, 0
      %p137 = por %p135, %p136
      %p138 = scmp.ne.s32.totalorder %s127, %s130
      %p139 = scmp.eq.s32.totalorder %s26, 1
      %p140 = por %p138, %p139
      %p141 = scmp.ne.s32.totalorder %s130, %s131
      %p142 = scmp.eq.s32.totalorder %s26, 0
      %p143 = por %p141, %p142
      %p144 = scmp.ne.s32.totalorder %s130, %s131
      %p145 = scmp.eq.s32.totalorder %s27, 1
      %p146 = por %p144, %p145
      %p148 = scmp.ne.s32.totalorder %s131, %s147
      %p149 = scmp.eq.s32.totalorder %s27, 0
      %p150 = por %p148, %p149
      %s151 = ssub.s32 %s28, %s40
      %p152 = scmp.eq.s32.totalorder %s151, 0
      %s154 = sadd.s32 %s153, 1
      %s155 = scalar_select %p152, %s153, %s154
      %p158 = pneg %p152
      %p159 = scmp.eq.s32.totalorder %s21, 1
      %p160 = por %p158, %p159
      %p161 = scmp.ne.s32.totalorder %s153, %s156
      %p162 = scmp.eq.s32.totalorder %s21, 0
      %p163 = por %p161, %p162
      %p164 = scmp.ne.s32.totalorder %s153, %s156
      %p165 = scmp.eq.s32.totalorder %s26, 1
      %p166 = por %p164, %p165
      %p167 = scmp.ne.s32.totalorder %s156, %s157
      %p168 = scmp.eq.s32.totalorder %s26, 0
      %p169 = por %p167, %p168
      %p170 = scmp.ne.s32.totalorder %s156, %s157
      %p171 = scmp.eq.s32.totalorder %s27, 1
      %p172 = por %p170, %p171
      %p174 = scmp.ne.s32.totalorder %s157, %s173
      %p175 = scmp.eq.s32.totalorder %s27, 0
      %p176 = por %p174, %p175
      %s178 = sadd.s32 %s177, 1
      %p181 = scmp.eq.s32.totalorder %s21, 1
      %p182 = scmp.ne.s32.totalorder %s177, %s179
      %p183 = scmp.eq.s32.totalorder %s21, 0
      %p184 = por %p182, %p183
      %p185 = scmp.ne.s32.totalorder %s177, %s179
      %p186 = scmp.eq.s32.totalorder %s26, 1
      %p187 = por %p185, %p186
      %p188 = scmp.ne.s32.totalorder %s179, %s180
      %p189 = scmp.eq.s32.totalorder %s26, 0
      %p190 = por %p188, %p189
      %p191 = scmp.ne.s32.totalorder %s179, %s180
      %p192 = scmp.eq.s32.totalorder %s27, 1
      %p193 = por %p191, %p192
      %p195 = scmp.ne.s32.totalorder %s180, %s194
      %p196 = scmp.eq.s32.totalorder %s27, 0
      %p197 = por %p195, %p196
      %s198 = ssub.s32 %s28, %s40
      %s199 = ssub.s32 %s29, %s36
      %s200 = sor.u32 %s198, %s199
      %p201 = scmp.eq.s32.totalorder %s200, 0
      %s203 = sadd.s32 %s202, 1
      %s204 = scalar_select %p201, %s202, %s203
      %p207 = pneg %p201
      %p208 = scmp.eq.s32.totalorder %s21, 1
      %p209 = por %p207, %p208
      %p210 = scmp.ne.s32.totalorder %s202, %s205
      %p211 = scmp.eq.s32.totalorder %s21, 0
      %p212 = por %p210, %p211
      %p213 = scmp.ne.s32.totalorder %s202, %s205
      %p214 = scmp.eq.s32.totalorder %s26, 1
      %p215 = por %p213, %p214
      %p216 = scmp.ne.s32.totalorder %s205, %s206
      %p217 = scmp.eq.s32.totalorder %s26, 0
      %p218 = por %p216, %p217
      %p219 = scmp.ne.s32.totalorder %s205, %s206
      %p220 = scmp.eq.s32.totalorder %s27, 1
      %p221 = por %p219, %p220
      %p223 = scmp.ne.s32.totalorder %s206, %s222
      %p224 = scmp.eq.s32.totalorder %s27, 0
      %p225 = por %p223, %p224
      %p226 = scmp.le.s32.totalorder 1, %s21
      %p227 = scmp.lt.s32.totalorder %s21, 3
      %p228 = pnand %p226, %p227
      %p229 = pneg %p228
      // Predicated region
      $region9: #{tpu_custom_call.1} parent=5 // pred_check
        _
      $region10: #{tpu_custom_call.1} parent=5 // pred_check_branch
        %231 = sbr.rel (%p228) target = $region12
      $region11: #{tpu_custom_call.1} parent=5 // pred_region
        %s232 = ssub.s32 %s21, 1
        // Predicated region
        $region13: #{tpu_custom_call.1} parent=11 // pred_check
          %p233 = pneg %p190
        $region14: #{tpu_custom_call.1} parent=11 // pred_check_branch
          %235 = sbr.rel (%p233) target = $region16
        $region15: #{tpu_custom_call.1} parent=11 // pred_region
          _
        $region16: #{tpu_custom_call.1} parent=11 // pred_fallthru
          _
      $region12: #{tpu_custom_call.1} parent=5 // pred_fallthru
        _
      %p236 = scmp.lt.s32.totalorder %s21, 2
      // Predicated region
      $region17: #{tpu_custom_call.1} parent=5 // pred_check
        %p237 = pneg %p236
      $region18: #{tpu_custom_call.1} parent=5 // pred_check_branch
        %239 = sbr.rel (%p237) target = $region20
      $region19: #{tpu_custom_call.1} parent=5 // pred_region
        // Predicated region
        $region21: #{tpu_custom_call.1} parent=19 // pred_check
          %p240 = pneg %p55
        $region22: #{tpu_custom_call.1} parent=19 // pred_check_branch
          %242 = sbr.rel (%p240) target = $region24
        $region23: #{tpu_custom_call.1} parent=19 // pred_region
          %s243 = smul.u32 2, %s29
          %p244 = scmp.lt.s32.totalorder %s28, 1
          %s245 = scalar_select %p244, %s28, 1
          %p246 = scmp.lt.s32.totalorder %s243, 1
          %s247 = scalar_select %p246, %s243, 1
          %s248 = smul.addr %s245, 2
          %s249 = sadd.s32 %s247, %s248
          %s250 = smul.addr %s249, 8
          %s251 = scalar_lea.vmem %s0, %s250
          %s252 = smul.u32 2, %s29
        $region24: #{tpu_custom_call.1} parent=19 // pred_fallthru
          _
        // Predicated region
        $region25: #{tpu_custom_call.1} parent=19 // pred_check
          %p253 = pneg %p83
        $region26: #{tpu_custom_call.1} parent=19 // pred_check_branch
          %255 = sbr.rel (%p253) target = $region28
        $region27: #{tpu_custom_call.1} parent=19 // pred_region
          %s256 = smul.u32 2, %s29
          %p257 = scmp.lt.s32.totalorder %s28, 1
          %s258 = scalar_select %p257, %s28, 1
          %p259 = scmp.lt.s32.totalorder %s256, 1
          %s260 = scalar_select %p259, %s256, 1
          %s261 = smul.addr %s258, 2
          %s262 = sadd.s32 %s260, %s261
          %s263 = smul.addr %s262, 8
          %s264 = scalar_lea.vmem %s1, %s263
          %s265 = smul.u32 2, %s29
        $region28: #{tpu_custom_call.1} parent=19 // pred_fallthru
          _
        // Predicated region
        $region29: #{tpu_custom_call.1} parent=19 // pred_check
          %p266 = pneg %p109
        $region30: #{tpu_custom_call.1} parent=19 // pred_check_branch
          %268 = sbr.rel (%p266) target = $region32
        $region31: #{tpu_custom_call.1} parent=19 // pred_region
          %p269 = scmp.lt.s32.totalorder %s28, 1
          %s270 = scalar_select %p269, %s28, 1
          %s271 = smul.addr %s270, 4
          %s272 = scalar_lea.vmem %s2, %s271
        $region32: #{tpu_custom_call.1} parent=19 // pred_fallthru
          _
        // Predicated region
        $region33: #{tpu_custom_call.1} parent=19 // pred_check
          %p273 = pneg %p137
        $region34: #{tpu_custom_call.1} parent=19 // pred_check_branch
          %275 = sbr.rel (%p273) target = $region36
        $region35: #{tpu_custom_call.1} parent=19 // pred_region
          %s276 = sand.u32 %s127, 1
          %s277 = scalar_lea.sflag [#allocation4], %s276
          %s278 = sand.u32 %s127, 1
          %s279 = smul.addr %s278, 16
          %s280 = scalar_lea.vmem [#allocation3], %s279
          %s281 = smul.u32 2, %s29
          %s283 = ssub.s32 256, 256
          %284 = vsyncadd %s277, %s283
          %s285 = smul.addr %s28, 2
          %s286 = sadd.s32 %s281, %s285
          %s287 = smul.addr %s286, 128
          %s288 = scalar_lea.hbm %s3, %s287
          %s289 = sshll.u32 %s280, 4
          %s290 = int_to_ptr.vmem [resolvable:$true] %s289
          %295 = dma.hbm_to_vmem [thread:$0]  %s288, 256, %s290, %s277, 128, 128, 8
        $region36: #{tpu_custom_call.1} parent=19 // pred_fallthru
          _
        // Predicated region
        $region37: #{tpu_custom_call.1} parent=19 // pred_check
          %p296 = pneg %p163
        $region38: #{tpu_custom_call.1} parent=19 // pred_check_branch
          %298 = sbr.rel (%p296) target = $region40
        $region39: #{tpu_custom_call.1} parent=19 // pred_region
          %s299 = sand.u32 %s153, 1
          %s300 = scalar_lea.sflag [#allocation7], %s299
          %s301 = sand.u32 %s153, 1
          %s302 = smul.addr %s301, 16
          %s303 = scalar_lea.vmem [#allocation6], %s302
          %s305 = ssub.s32 256, 256
          %306 = vsyncadd %s300, %s305
          %s307 = smul.addr %s28, 2
          %s308 = smul.addr %s307, 128
          %s309 = scalar_lea.hbm %s4, %s308
          %s310 = sshll.u32 %s303, 4
          %s311 = int_to_ptr.vmem [resolvable:$true] %s310
          %316 = dma.hbm_to_vmem [thread:$0]  %s309, 256, %s311, %s300, 128, 128, 8
        $region40: #{tpu_custom_call.1} parent=19 // pred_fallthru
          _
      $region20: #{tpu_custom_call.1} parent=5 // pred_fallthru
        _
      %p317 = scmp.le.s32.totalorder 1, %s21
      %p318 = scmp.lt.s32.totalorder %s21, 3
      %p319 = pnand %p317, %p318
      %p320 = pneg %p319
      // Predicated region
      $region41: #{tpu_custom_call.1} parent=5 // pred_check
        _
      $region42: #{tpu_custom_call.1} parent=5 // pred_check_branch
        %322 = sbr.rel (%p319) target = $region44
      $region43: #{tpu_custom_call.1} parent=5 // pred_region
        %s323 = ssub.s32 %s21, 1
        %s324 = sand.u32 %s130, 1
        %s325 = scalar_lea.sflag [#allocation4], %s324
        %s326 = sand.u32 %s130, 1
        %s327 = smul.addr %s326, 16
        %s328 = scalar_lea.vmem [#allocation3], %s327
        // Predicated region
        $region45: #{tpu_custom_call.1} parent=43 // pred_check
          %p329 = pneg %p143
        $region46: #{tpu_custom_call.1} parent=43 // pred_check_branch
          %331 = sbr.rel (%p329) target = $region48
        $region47: #{tpu_custom_call.1} parent=43 // pred_region
          %332 = dma.done %s325, 256
        $region48: #{tpu_custom_call.1} parent=43 // pred_fallthru
          _
        %s333 = sand.u32 %s156, 1
        %s334 = scalar_lea.sflag [#allocation7], %s333
        %s335 = sand.u32 %s156, 1
        %s336 = smul.addr %s335, 16
        %s337 = scalar_lea.vmem [#allocation6], %s336
        // Predicated region
        $region49: #{tpu_custom_call.1} parent=43 // pred_check
          %p338 = pneg %p169
        $region50: #{tpu_custom_call.1} parent=43 // pred_check_branch
          %340 = sbr.rel (%p338) target = $region52
        $region51: #{tpu_custom_call.1} parent=43 // pred_region
          %341 = dma.done %s334, 256
        $region52: #{tpu_custom_call.1} parent=43 // pred_fallthru
          _
        %s342 = smul.u32 2, %s31
        %p343 = scmp.lt.s32.totalorder %s30, 1
        %s344 = scalar_select %p343, %s30, 1
        %p345 = scmp.lt.s32.totalorder %s342, 1
        %s346 = scalar_select %p345, %s342, 1
        %s347 = smul.addr %s344, 2
        %s348 = sadd.s32 %s346, %s347
        %s349 = smul.addr %s348, 8
        %s350 = scalar_lea.vmem %s0, %s349
        %p351 = pneg %p61
        %p352 = pneg %p58
        %s353 = smul.u32 2, %s31
        %p354 = scmp.lt.s32.totalorder %s30, 1
        %s355 = scalar_select %p354, %s30, 1
        %p356 = scmp.lt.s32.totalorder %s353, 1
        %s357 = scalar_select %p356, %s353, 1
        %s358 = smul.addr %s355, 2
        %s359 = sadd.s32 %s357, %s358
        %s360 = smul.addr %s359, 8
        %s361 = scalar_lea.vmem %s1, %s360
        %p362 = pneg %p89
        %p363 = pneg %p86
        %p364 = scmp.lt.s32.totalorder %s30, 1
        %s365 = scalar_select %p364, %s30, 1
        %s366 = smul.addr %s365, 4
        %s367 = scalar_lea.vmem %s2, %s366
        %p368 = pneg %p115
        %p369 = pneg %p112
        %s370 = sand.u32 %s130, 1
        %s371 = scalar_lea.sflag [#allocation4], %s370
        %s372 = sand.u32 %s130, 1
        %s373 = smul.addr %s372, 16
        %s374 = scalar_lea.vmem [#allocation3], %s373
        %p375 = pneg %p143
        %p376 = pneg %p140
        %s377 = sand.u32 %s156, 1
        %s378 = scalar_lea.sflag [#allocation7], %s377
        %s379 = sand.u32 %s156, 1
        %s380 = smul.addr %s379, 16
        %s381 = scalar_lea.vmem [#allocation6], %s380
        %p382 = pneg %p169
        %p383 = pneg %p166
        %p384 = pneg %p190
        %p385 = pneg %p187
        %p386 = pneg %p218
        %p387 = pneg %p215
        %s388 = sand.u32 %s205, 1
        %s389 = scalar_lea.sflag [#allocation5], %s388
        %s390 = sand.u32 %s205, 1
        %s391 = smul.addr %s390, 16
        %s392 = scalar_lea.vmem [#allocation8], %s391
        %s393 = smul.u32 2, %s31
        %p394 = scmp.lt.s32.totalorder %s30, 1
        %s395 = scalar_select %p394, %s30, 1
        %p396 = scmp.lt.s32.totalorder %s393, 1
        %s397 = scalar_select %p396, %s393, 1
        %s398 = smul.addr %s395, 2
        %s399 = sadd.s32 %s397, %s398
        %s400 = smul.addr %s399, 8
        %s401 = scalar_lea.vmem %s0, %s400
        %s402 = smul.u32 2, %s31
        %s403 = smul.u32 2, %s31
        %p404 = scmp.lt.s32.totalorder %s30, 1
        %s405 = scalar_select %p404, %s30, 1
        %p406 = scmp.lt.s32.totalorder %s403, 1
        %s407 = scalar_select %p406, %s403, 1
        %s408 = smul.addr %s405, 2
        %s409 = sadd.s32 %s407, %s408
        %s410 = smul.addr %s409, 8
        %s411 = scalar_lea.vmem %s1, %s410
        %s412 = smul.u32 2, %s31
        %p413 = scmp.lt.s32.totalorder %s30, 1
        %s414 = scalar_select %p413, %s30, 1
        %s415 = smul.addr %s414, 4
        %s416 = scalar_lea.vmem %s2, %s415
        %s417 = smul.u32 2, %s31
        %s418 = smul.u32 2, %s31
        %v419 = vld [vmem:[%s411] sm:$0xff]
        %v420 = vld [vmem:[%s411 + $0x8] sm:$0xff]
        %v421 = vld [vmem:[%s416] sm:$0xf]
        %v422 = vld [vmem:[%s337] sm:$0xff]
        %v423 = vld [vmem:[%s337 + $0x8] sm:$0xff]
        %v424 = vld [vmem:[%s401] sm:$0xff]
        %v425 = vld [vmem:[%s401 + $0x8] sm:$0xff]
        %vm426 = vcmp.lt.f32.partialorder %v424, 0.5
        %vm427 = vcmp.lt.f32.partialorder %v425, 0.5
        %v428 = vsel %vm426, -1e+30, 0.0
        %v429 = vsel %vm427, -1e+30, 0.0
        %431 = vset.pattern.permute.xlu0 0
        %432 = vperm.xlu0 %431, %v419
        %v433 = vpop.permute.xlu0 %432
        %436 = vset.pattern.permute.xlu0 0
        %437 = vperm.xlu0 %436, %v420
        %v438 = vpop.permute.xlu0 %437
        %v440 = vlaneseq
        %v441 = vshrl.u32 %v440, 7
        %v442 = vsub.s32 0, %v441
        %v443 = vrot.slane %v421, %v442
        %v444 = vadd.f32 %v433, %v443
        %v445 = vadd.f32 %v438, %v443
        %vm446 = vcmp.gt.f32.partialorder %v444, 0.0
        %vm447 = vcmp.gt.f32.partialorder %v445, 0.0
        %v448 = vmul.f32 %v444, 0.2
        %v449 = vmul.f32 %v445, 0.2
        %v450 = vsel %vm446, %v444, %v448
        %v451 = vsel %vm447, %v445, %v449
        %v452 = vadd.f32 %v450, %v428
        %v453 = vadd.f32 %v451, %v429
        %vm454 = vcmask 130048
        %v455 = vsel %vm454, %v452, -inf
        %456 = vmax.xlane.f32.xlu0 %v455
        %v457 = vpop.xlane.xlu0 %456
        %v458 = vsel %vm454, %v453, -inf
        %459 = vmax.xlane.f32.xlu0 %v458
        %v460 = vpop.xlane.xlu0 %459
        %v461 = vsub.f32 %v452, %v457
        %v462 = vsub.f32 %v453, %v460
        %v463 = vmul.f32 %v461, 1.442695
        %v464 = vpow.pop %v463
        %v465 = vmul.f32 %v462, 1.442695
        %v466 = vpow.pop %v465
        %v468 = vsel %vm454, %v464, 0
        %v471 = vsel %vm454, %v466, 0
        %473 = vmatprep.subr.mxu0 0.0
        %474 = vmatpush1.msra.mxu0 %v422
        %475 = vmatprep.subr.mxu0 0.0
        %476 = vmatpush1.msra.mxu0 %v423
        %477 = vmatprep.subr.mxu0 0.0
        %478 = vmatpush1.msra.mxu0 0.0
        %479 = vmatprep.subr.mxu0 0.0
        %480 = vmatpush1.msra.mxu0 0.0
        %481 = vmatprep.subr.mxu0 0.0
        %482 = vmatpush1.msra.mxu0 0.0
        %483 = vmatprep.subr.mxu0 0.0
        %484 = vmatpush1.msra.mxu0 0.0
        %485 = vmatprep.subr.mxu0 0.0
        %486 = vmatpush1.msra.mxu0 0.0
        %487 = vmatprep.subr.mxu0 0.0
        %488 = vmatpush1.msra.mxu0 0.0
        %489 = vmatprep.subr.mxu0 0.0
        %490 = vmatpush1.msra.mxu0 0.0
        %491 = vmatprep.subr.mxu0 0.0
        %492 = vmatpush1.msra.mxu0 0.0
        %493 = vmatprep.subr.mxu0 0.0
        %494 = vmatpush1.msra.mxu0 0.0
        %495 = vmatprep.subr.mxu0 0.0
        %496 = vmatpush1.msra.mxu0 0.0
        %497 = vmatprep.subr.mxu0 0.0
        %498 = vmatpush1.msra.mxu0 0.0
        %499 = vmatprep.subr.mxu0 0.0
        %500 = vmatpush1.msra.mxu0 0.0
        %501 = vmatprep.subr.mxu0 0.0
        %502 = vmatpush1.msra.mxu0 0.0
        %503 = vmatprep.subr.mxu0 0.0
        %504 = vmatpush1.msra.mxu0 0.0
        %505 = vmatprep.subr.mxu0 0.0
        %506 = vmatpush1.msra.mxu0 0.0
        %507 = vmatprep.subr.mxu0 0.0
        %508 = vmatpush1.msra.mxu0 0.0
        %509 = vmatprep.subr.mxu0 0.0
        %510 = vmatpush1.msra.mxu0 0.0
        %511 = vmatprep.subr.mxu0 0.0
        %512 = vmatpush1.msra.mxu0 0.0
        %513 = vmatprep.subr.mxu0 0.0
        %514 = vmatpush1.msra.mxu0 0.0
        %515 = vmatprep.subr.mxu0 0.0
        %516 = vmatpush1.msra.mxu0 0.0
        %517 = vmatprep.subr.mxu0 0.0
        %518 = vmatpush1.msra.mxu0 0.0
        %519 = vmatprep.subr.mxu0 0.0
        %520 = vmatpush1.msra.mxu0 0.0
        %521 = vmatprep.subr.mxu0 0.0
        %522 = vmatpush1.msra.mxu0 0.0
        %523 = vmatprep.subr.mxu0 0.0
        %524 = vmatpush1.msra.mxu0 0.0
        %525 = vmatprep.subr.mxu0 0.0
        %526 = vmatpush1.msra.mxu0 0.0
        %527 = vmatprep.subr.mxu0 0.0
        %528 = vmatpush1.msra.mxu0 0.0
        %529 = vmatprep.subr.mxu0 0.0
        %530 = vmatpush1.msra.mxu0 0.0
        %531 = vmatprep.subr.mxu0 0.0
        %532 = vmatpush1.msra.mxu0 0.0
        %533 = vmatprep.subr.mxu0 0.0
        %534 = vmatpush1.msra.mxu0 0.0
        %535 = vmatprep.subr.mxu0 0.0
        %536 = vmatpush1.msra.mxu0 0.0
        %537 = vmatprep.mubr.f32.mxu0 0.0
        %538 = vmatmul.mubr.f32.gmra.mrb[0].mxu0 %v468
        %v539 = vpop.f32.mrb[0].mxu0
        %v540 = vadd.f32 0.0, %v539
        %v541 = vpop.f32.mrb[0].mxu0
        %542 = vmatprep.mubr.f32.mxu0 0.0
        %543 = vmatmul.mubr.f32.gmra.mrb[0].mxu0 %v471
        %v544 = vpop.f32.mrb[0].mxu0
        %v545 = vadd.f32 0.0, %v544
        %v546 = vpop.f32.mrb[0].mxu0
        %547 = vdwg.mxu0
        %549 = vset.pattern.permute.xlu0 8
        %550 = vperm.xlu0 %549, %v540
        %v551 = vpop.permute.xlu0 %550
        %554 = vset.pattern.permute.xlu0 8
        %555 = vperm.xlu0 %554, %v545
        %v556 = vpop.permute.xlu0 %555
        %v558 = vrcp.pop %v551
        %v559 = vmul.f32 %v540, %v558
        %v560 = vrcp.pop %v556
        %v561 = vmul.f32 %v545, %v560
        %vm562 = vcmask 64512
        %563 = vst.msk [vmem:[#allocation2] sm:$0xff] %vm562, %v559
        %564 = vst.msk [vmem:[#allocation2 + $0x8] sm:$0xff] %vm562, %v561
        %565 = vset.pattern.permute.xlu0 1
        %566 = vperm.xlu0 %565, %v419
        %v567 = vpop.permute.xlu0 %566
        %569 = vset.pattern.permute.xlu0 1
        %570 = vperm.xlu0 %569, %v420
        %v571 = vpop.permute.xlu0 %570
        %v573 = vlaneseq
        %v574 = vshrl.u32 %v573, 7
        %v575 = vsub.s32 1, %v574
        %v576 = vrot.slane %v421, %v575
        %v577 = vadd.f32 %v567, %v576
        %v578 = vadd.f32 %v571, %v576
        %vm579 = vcmp.gt.f32.partialorder %v577, 0.0
        %vm580 = vcmp.gt.f32.partialorder %v578, 0.0
        %v581 = vmul.f32 %v577, 0.2
        %v582 = vmul.f32 %v578, 0.2
        %v583 = vsel %vm579, %v577, %v581
        %v584 = vsel %vm580, %v578, %v582
        %v585 = vadd.f32 %v583, %v428
        %v586 = vadd.f32 %v584, %v429
        %v587 = vsel %vm454, %v585, -inf
        %588 = vmax.xlane.f32.xlu0 %v587
        %v589 = vpop.xlane.xlu0 %588
        %v590 = vsel %vm454, %v586, -inf
        %591 = vmax.xlane.f32.xlu0 %v590
        %v592 = vpop.xlane.xlu0 %591
        %v593 = vsub.f32 %v585, %v589
        %v594 = vsub.f32 %v586, %v592
        %v595 = vmul.f32 %v593, 1.442695
        %v596 = vpow.pop %v595
        %v597 = vmul.f32 %v594, 1.442695
        %v598 = vpow.pop %v597
        %601 = vrot.lane.b32.xlu0 %v422, 119
        %v602 = vpop.permute.xlu0 %601
        %603 = vrot.lane.b32.xlu0 %v423, 119
        %v604 = vpop.permute.xlu0 %603
        %v608 = vsel %vm454, %v596, 0
        %v611 = vsel %vm454, %v598, 0
        %613 = vmatprep.subr.mxu0 0.0
        %614 = vmatpush1.msra.mxu0 %v602
        %615 = vmatprep.subr.mxu0 0.0
        %616 = vmatpush1.msra.mxu0 %v604
        %617 = vmatprep.subr.mxu0 0.0
        %618 = vmatpush1.msra.mxu0 0.0
        %619 = vmatprep.subr.mxu0 0.0
        %620 = vmatpush1.msra.mxu0 0.0
        %621 = vmatprep.subr.mxu0 0.0
        %622 = vmatpush1.msra.mxu0 0.0
        %623 = vmatprep.subr.mxu0 0.0
        %624 = vmatpush1.msra.mxu0 0.0
        %625 = vmatprep.subr.mxu0 0.0
        %626 = vmatpush1.msra.mxu0 0.0
        %627 = vmatprep.subr.mxu0 0.0
        %628 = vmatpush1.msra.mxu0 0.0
        %629 = vmatprep.subr.mxu0 0.0
        %630 = vmatpush1.msra.mxu0 0.0
        %631 = vmatprep.subr.mxu0 0.0
        %632 = vmatpush1.msra.mxu0 0.0
        %633 = vmatprep.subr.mxu0 0.0
        %634 = vmatpush1.msra.mxu0 0.0
        %635 = vmatprep.subr.mxu0 0.0
        %636 = vmatpush1.msra.mxu0 0.0
        %637 = vmatprep.subr.mxu0 0.0
        %638 = vmatpush1.msra.mxu0 0.0
        %639 = vmatprep.subr.mxu0 0.0
        %640 = vmatpush1.msra.mxu0 0.0
        %641 = vmatprep.subr.mxu0 0.0
        %642 = vmatpush1.msra.mxu0 0.0
        %643 = vmatprep.subr.mxu0 0.0
        %644 = vmatpush1.msra.mxu0 0.0
        %645 = vmatprep.subr.mxu0 0.0
        %646 = vmatpush1.msra.mxu0 0.0
        %647 = vmatprep.subr.mxu0 0.0
        %648 = vmatpush1.msra.mxu0 0.0
        %649 = vmatprep.subr.mxu0 0.0
        %650 = vmatpush1.msra.mxu0 0.0
        %651 = vmatprep.subr.mxu0 0.0
        %652 = vmatpush1.msra.mxu0 0.0
        %653 = vmatprep.subr.mxu0 0.0
        %654 = vmatpush1.msra.mxu0 0.0
        %655 = vmatprep.subr.mxu0 0.0
        %656 = vmatpush1.msra.mxu0 0.0
        %657 = vmatprep.subr.mxu0 0.0
        %658 = vmatpush1.msra.mxu0 0.0
        %659 = vmatprep.subr.mxu0 0.0
        %660 = vmatpush1.msra.mxu0 0.0
        %661 = vmatprep.subr.mxu0 0.0
        %662 = vmatpush1.msra.mxu0 0.0
        %663 = vmatprep.subr.mxu0 0.0
        %664 = vmatpush1.msra.mxu0 0.0
        %665 = vmatprep.subr.mxu0 0.0
        %666 = vmatpush1.msra.mxu0 0.0
        %667 = vmatprep.subr.mxu0 0.0
        %668 = vmatpush1.msra.mxu0 0.0
        %669 = vmatprep.subr.mxu0 0.0
        %670 = vmatpush1.msra.mxu0 0.0
        %671 = vmatprep.subr.mxu0 0.0
        %672 = vmatpush1.msra.mxu0 0.0
        %673 = vmatprep.subr.mxu0 0.0
        %674 = vmatpush1.msra.mxu0 0.0
        %675 = vmatprep.subr.mxu0 0.0
        %676 = vmatpush1.msra.mxu0 0.0
        %677 = vmatprep.mubr.f32.mxu0 0.0
        %678 = vmatmul.mubr.f32.gmra.mrb[0].mxu0 %v608
        %v679 = vpop.f32.mrb[0].mxu0
        %v680 = vadd.f32 0.0, %v679
        %v681 = vpop.f32.mrb[0].mxu0
        %682 = vmatprep.mubr.f32.mxu0 0.0
        %683 = vmatmul.mubr.f32.gmra.mrb[0].mxu0 %v611
        %v684 = vpop.f32.mrb[0].mxu0
        %v685 = vadd.f32 0.0, %v684
        %v686 = vpop.f32.mrb[0].mxu0
        %687 = vdwg.mxu0
        %689 = vset.pattern.permute.xlu0 8
        %690 = vperm.xlu0 %689, %v680
        %v691 = vpop.permute.xlu0 %690
        %694 = vset.pattern.permute.xlu0 8
        %695 = vperm.xlu0 %694, %v685
        %v696 = vpop.permute.xlu0 %695
        %v698 = vrcp.pop %v691
        %v699 = vmul.f32 %v680, %v698
        %v700 = vrcp.pop %v696
        %v701 = vmul.f32 %v685, %v700
        %704 = vrot.lane.b32.xlu0 %v699, 8
        %v705 = vpop.permute.xlu0 %704
        %706 = vrot.lane.b32.xlu0 %v701, 8
        %v707 = vpop.permute.xlu0 %706
        %vm710 = vcmask 130112
        %711 = vst.msk [vmem:[#allocation2] sm:$0xff] %vm710, %v705
        %712 = vst.msk [vmem:[#allocation2 + $0x8] sm:$0xff] %vm710, %v707
        %713 = vset.pattern.permute.xlu0 2
        %714 = vperm.xlu0 %713, %v419
        %v715 = vpop.permute.xlu0 %714
        %717 = vset.pattern.permute.xlu0 2
        %718 = vperm.xlu0 %717, %v420
        %v719 = vpop.permute.xlu0 %718
        %v721 = vlaneseq
        %v722 = vshrl.u32 %v721, 7
        %v723 = vsub.s32 2, %v722
        %v724 = vrot.slane %v421, %v723
        %v725 = vadd.f32 %v715, %v724
        %v726 = vadd.f32 %v719, %v724
        %vm727 = vcmp.gt.f32.partialorder %v725, 0.0
        %vm728 = vcmp.gt.f32.partialorder %v726, 0.0
        %v729 = vmul.f32 %v725, 0.2
        %v730 = vmul.f32 %v726, 0.2
        %v731 = vsel %vm727, %v725, %v729
        %v732 = vsel %vm728, %v726, %v730
        %v733 = vadd.f32 %v731, %v428
        %v734 = vadd.f32 %v732, %v429
        %v735 = vsel %vm454, %v733, -inf
        %736 = vmax.xlane.f32.xlu0 %v735
        %v737 = vpop.xlane.xlu0 %736
        %v738 = vsel %vm454, %v734, -inf
        %739 = vmax.xlane.f32.xlu0 %v738
        %v740 = vpop.xlane.xlu0 %739
        %v741 = vsub.f32 %v733, %v737
        %v742 = vsub.f32 %v734, %v740
        %v743 = vmul.f32 %v741, 1.442695
        %v744 = vpow.pop %v743
        %v745 = vmul.f32 %v742, 1.442695
        %v746 = vpow.pop %v745
        %747 = vrot.lane.b32.xlu0 %v422, 110
        %v748 = vpop.permute.xlu0 %747
        %749 = vrot.lane.b32.xlu0 %v423, 110
        %v750 = vpop.permute.xlu0 %749
        %v754 = vsel %vm454, %v744, 0
        %v757 = vsel %vm454, %v746, 0
        %759 = vmatprep.subr.mxu0 0.0
        %760 = vmatpush1.msra.mxu0 %v748
        %761 = vmatprep.subr.mxu0 0.0
        %762 = vmatpush1.msra.mxu0 %v750
        %763 = vmatprep.subr.mxu0 0.0
        %764 = vmatpush1.msra.mxu0 0.0
        %765 = vmatprep.subr.mxu0 0.0
        %766 = vmatpush1.msra.mxu0 0.0
        %767 = vmatprep.subr.mxu0 0.0
        %768 = vmatpush1.msra.mxu0 0.0
        %769 = vmatprep.subr.mxu0 0.0
        %770 = vmatpush1.msra.mxu0 0.0
        %771 = vmatprep.subr.mxu0 0.0
        %772 = vmatpush1.msra.mxu0 0.0
        %773 = vmatprep.subr.mxu0 0.0
        %774 = vmatpush1.msra.mxu0 0.0
        %775 = vmatprep.subr.mxu0 0.0
        %776 = vmatpush1.msra.mxu0 0.0
        %777 = vmatprep.subr.mxu0 0.0
        %778 = vmatpush1.msra.mxu0 0.0
        %779 = vmatprep.subr.mxu0 0.0
        %780 = vmatpush1.msra.mxu0 0.0
        %781 = vmatprep.subr.mxu0 0.0
        %782 = vmatpush1.msra.mxu0 0.0
        %783 = vmatprep.subr.mxu0 0.0
        %784 = vmatpush1.msra.mxu0 0.0
        %785 = vmatprep.subr.mxu0 0.0
        %786 = vmatpush1.msra.mxu0 0.0
        %787 = vmatprep.subr.mxu0 0.0
        %788 = vmatpush1.msra.mxu0 0.0
        %789 = vmatprep.subr.mxu0 0.0
        %790 = vmatpush1.msra.mxu0 0.0
        %791 = vmatprep.subr.mxu0 0.0
        %792 = vmatpush1.msra.mxu0 0.0
        %793 = vmatprep.subr.mxu0 0.0
        %794 = vmatpush1.msra.mxu0 0.0
        %795 = vmatprep.subr.mxu0 0.0
        %796 = vmatpush1.msra.mxu0 0.0
        %797 = vmatprep.subr.mxu0 0.0
        %798 = vmatpush1.msra.mxu0 0.0
        %799 = vmatprep.subr.mxu0 0.0
        %800 = vmatpush1.msra.mxu0 0.0
        %801 = vmatprep.subr.mxu0 0.0
        %802 = vmatpush1.msra.mxu0 0.0
        %803 = vmatprep.subr.mxu0 0.0
        %804 = vmatpush1.msra.mxu0 0.0
        %805 = vmatprep.subr.mxu0 0.0
        %806 = vmatpush1.msra.mxu0 0.0
        %807 = vmatprep.subr.mxu0 0.0
        %808 = vmatpush1.msra.mxu0 0.0
        %809 = vmatprep.subr.mxu0 0.0
        %810 = vmatpush1.msra.mxu0 0.0
        %811 = vmatprep.subr.mxu0 0.0
        %812 = vmatpush1.msra.mxu0 0.0
        %813 = vmatprep.subr.mxu0 0.0
        %814 = vmatpush1.msra.mxu0 0.0
        %815 = vmatprep.subr.mxu0 0.0
        %816 = vmatpush1.msra.mxu0 0.0
        %817 = vmatprep.subr.mxu0 0.0
        %818 = vmatpush1.msra.mxu0 0.0
        %819 = vmatprep.subr.mxu0 0.0
        %820 = vmatpush1.msra.mxu0 0.0
        %821 = vmatprep.subr.mxu0 0.0
        %822 = vmatpush1.msra.mxu0 0.0
        %823 = vmatprep.mubr.f32.mxu0 0.0
        %824 = vmatmul.mubr.f32.gmra.mrb[0].mxu0 %v754
        %v825 = vpop.f32.mrb[0].mxu0
        %v826 = vadd.f32 0.0, %v825
        %v827 = vpop.f32.mrb[0].mxu0
        %828 = vmatprep.mubr.f32.mxu0 0.0
        %829 = vmatmul.mubr.f32.gmra.mrb[0].mxu0 %v757
        %v830 = vpop.f32.mrb[0].mxu0
        %v831 = vadd.f32 0.0, %v830
        %v832 = vpop.f32.mrb[0].mxu0
        %833 = vdwg.mxu0
        %835 = vset.pattern.permute.xlu0 8
        %836 = vperm.xlu0 %835, %v826
        %v837 = vpop.permute.xlu0 %836
        %840 = vset.pattern.permute.xlu0 8
        %841 = vperm.xlu0 %840, %v831
        %v842 = vpop.permute.xlu0 %841
        %v844 = vrcp.pop %v837
        %v845 = vmul.f32 %v826, %v844
        %v846 = vrcp.pop %v842
        %v847 = vmul.f32 %v831, %v846
        %850 = vrot.lane.b32.xlu0 %v845, 16
        %v851 = vpop.permute.xlu0 %850
        %852 = vrot.lane.b32.xlu0 %v847, 16
        %v853 = vpop.permute.xlu0 %852
        %vm856 = vcmask 195712
        %857 = vst.msk [vmem:[#allocation2] sm:$0xff] %vm856, %v851
        %858 = vst.msk [vmem:[#allocation2 + $0x8] sm:$0xff] %vm856, %v853
        %859 = vset.pattern.permute.xlu0 3
        %860 = vperm.xlu0 %859, %v419
        %v861 = vpop.permute.xlu0 %860
        %863 = vset.pattern.permute.xlu0 3
        %864 = vperm.xlu0 %863, %v420
        %v865 = vpop.permute.xlu0 %864
        %v867 = vlaneseq
        %v868 = vshrl.u32 %v867, 7
        %v869 = vsub.s32 3, %v868
        %v870 = vrot.slane %v421, %v869
        %v871 = vadd.f32 %v861, %v870
        %v872 = vadd.f32 %v865, %v870
        %vm873 = vcmp.gt.f32.partialorder %v871, 0.0
        %vm874 = vcmp.gt.f32.partialorder %v872, 0.0
        %v875 = vmul.f32 %v871, 0.2
        %v876 = vmul.f32 %v872, 0.2
        %v877 = vsel %vm873, %v871, %v875
        %v878 = vsel %vm874, %v872, %v876
        %v879 = vadd.f32 %v877, %v428
        %v880 = vadd.f32 %v878, %v429
        %v881 = vsel %vm454, %v879, -inf
        %882 = vmax.xlane.f32.xlu0 %v881
        %v883 = vpop.xlane.xlu0 %882
        %v884 = vsel %vm454, %v880, -inf
        %885 = vmax.xlane.f32.xlu0 %v884
        %v886 = vpop.xlane.xlu0 %885
        %v887 = vsub.f32 %v879, %v883
        %v888 = vsub.f32 %v880, %v886
        %v889 = vmul.f32 %v887, 1.442695
        %v890 = vpow.pop %v889
        %v891 = vmul.f32 %v888, 1.442695
        %v892 = vpow.pop %v891
        %893 = vrot.lane.b32.xlu0 %v422, 101
        %v894 = vpop.permute.xlu0 %893
        %895 = vrot.lane.b32.xlu0 %v423, 101
        %v896 = vpop.permute.xlu0 %895
        %v900 = vsel %vm454, %v890, 0
        %v903 = vsel %vm454, %v892, 0
        %905 = vmatprep.subr.mxu0 0.0
        %906 = vmatpush1.msra.mxu0 %v894
        %907 = vmatprep.subr.mxu0 0.0
        %908 = vmatpush1.msra.mxu0 %v896
        %909 = vmatprep.subr.mxu0 0.0
        %910 = vmatpush1.msra.mxu0 0.0
        %911 = vmatprep.subr.mxu0 0.0
        %912 = vmatpush1.msra.mxu0 0.0
        %913 = vmatprep.subr.mxu0 0.0
        %914 = vmatpush1.msra.mxu0 0.0
        %915 = vmatprep.subr.mxu0 0.0
        %916 = vmatpush1.msra.mxu0 0.0
        %917 = vmatprep.subr.mxu0 0.0
        %918 = vmatpush1.msra.mxu0 0.0
        %919 = vmatprep.subr.mxu0 0.0
        %920 = vmatpush1.msra.mxu0 0.0
        %921 = vmatprep.subr.mxu0 0.0
        %922 = vmatpush1.msra.mxu0 0.0
        %923 = vmatprep.subr.mxu0 0.0
        %924 = vmatpush1.msra.mxu0 0.0
        %925 = vmatprep.subr.mxu0 0.0
        %926 = vmatpush1.msra.mxu0 0.0
        %927 = vmatprep.subr.mxu0 0.0
        %928 = vmatpush1.msra.mxu0 0.0
        %929 = vmatprep.subr.mxu0 0.0
        %930 = vmatpush1.msra.mxu0 0.0
        %931 = vmatprep.subr.mxu0 0.0
        %932 = vmatpush1.msra.mxu0 0.0
        %933 = vmatprep.subr.mxu0 0.0
        %934 = vmatpush1.msra.mxu0 0.0
        %935 = vmatprep.subr.mxu0 0.0
        %936 = vmatpush1.msra.mxu0 0.0
        %937 = vmatprep.subr.mxu0 0.0
        %938 = vmatpush1.msra.mxu0 0.0
        %939 = vmatprep.subr.mxu0 0.0
        %940 = vmatpush1.msra.mxu0 0.0
        %941 = vmatprep.subr.mxu0 0.0
        %942 = vmatpush1.msra.mxu0 0.0
        %943 = vmatprep.subr.mxu0 0.0
        %944 = vmatpush1.msra.mxu0 0.0
        %945 = vmatprep.subr.mxu0 0.0
        %946 = vmatpush1.msra.mxu0 0.0
        %947 = vmatprep.subr.mxu0 0.0
        %948 = vmatpush1.msra.mxu0 0.0
        %949 = vmatprep.subr.mxu0 0.0
        %950 = vmatpush1.msra.mxu0 0.0
        %951 = vmatprep.subr.mxu0 0.0
        %952 = vmatpush1.msra.mxu0 0.0
        %953 = vmatprep.subr.mxu0 0.0
        %954 = vmatpush1.msra.mxu0 0.0
        %955 = vmatprep.subr.mxu0 0.0
        %956 = vmatpush1.msra.mxu0 0.0
        %957 = vmatprep.subr.mxu0 0.0
        %958 = vmatpush1.msra.mxu0 0.0
        %959 = vmatprep.subr.mxu0 0.0
        %960 = vmatpush1.msra.mxu0 0.0
        %961 = vmatprep.subr.mxu0 0.0
        %962 = vmatpush1.msra.mxu0 0.0
        %963 = vmatprep.subr.mxu0 0.0
        %964 = vmatpush1.msra.mxu0 0.0
        %965 = vmatprep.subr.mxu0 0.0
        %966 = vmatpush1.msra.mxu0 0.0
        %967 = vmatprep.subr.mxu0 0.0
        %968 = vmatpush1.msra.mxu0 0.0
        %969 = vmatprep.mubr.f32.mxu0 0.0
        %970 = vmatmul.mubr.f32.gmra.mrb[0].mxu0 %v900
        %v971 = vpop.f32.mrb[0].mxu0
        %v972 = vadd.f32 0.0, %v971
        %v973 = vpop.f32.mrb[0].mxu0
        %974 = vmatprep.mubr.f32.mxu0 0.0
        %975 = vmatmul.mubr.f32.gmra.mrb[0].mxu0 %v903
        %v976 = vpop.f32.mrb[0].mxu0
        %v977 = vadd.f32 0.0, %v976
        %v978 = vpop.f32.mrb[0].mxu0
        %979 = vdwg.mxu0
        %981 = vset.pattern.permute.xlu0 8
        %982 = vperm.xlu0 %981, %v972
        %v983 = vpop.permute.xlu0 %982
        %986 = vset.pattern.permute.xlu0 8
        %987 = vperm.xlu0 %986, %v977
        %v988 = vpop.permute.xlu0 %987
        %v990 = vrcp.pop %v983
        %v991 = vmul.f32 %v972, %v990
        %v992 = vrcp.pop %v988
        %v993 = vmul.f32 %v977, %v992
        %996 = vrot.lane.b32.xlu0 %v991, 24
        %v997 = vpop.permute.xlu0 %996
        %998 = vrot.lane.b32.xlu0 %v993, 24
        %v999 = vpop.permute.xlu0 %998
        %vm1002 = vcmask 261312
        %1003 = vst.msk [vmem:[#allocation2] sm:$0xff] %vm1002, %v997
        %1004 = vst.msk [vmem:[#allocation2 + $0x8] sm:$0xff] %vm1002, %v999
        %v1005 = vld [vmem:[#allocation2] sm:$0xff]
        %v1006 = vld [vmem:[#allocation2 + $0x8] sm:$0xff]
        %v1007 = vld [vmem:[%s328] sm:$0xff]
        %v1008 = vld [vmem:[%s328 + $0x8] sm:$0xff]
        %v1009 = vadd.f32 %v1005, %v1007
        %v1010 = vadd.f32 %v1006, %v1008
        %v1011 = vld [vmem:[%s5] sm:$0x1]
        %v1013 = vlaneseq
        %v1014 = vshrl.u32 %v1013, 7
        %v1015 = vsub.s32 0, %v1014
        %v1016 = vrot.slane %v1011, %v1015
        %v1018 = vadd.f32 %v1009, %v1016
        %v1019 = vadd.f32 %v1010, %v1016
        %vm1020 = vcmp.gt.f32.partialorder %v1018, 0.0
        %vm1021 = vcmp.gt.f32.partialorder %v1019, 0.0
        %v1022 = vmin.f32 %v1018, 0.0
        %v1023 = vmin.f32 %v1019, 0.0
        %v1024 = vmul.f32 %v1022, 1.442695
        %v1025 = vpow.pop %v1024
        %v1026 = vmul.f32 %v1023, 1.442695
        %v1027 = vpow.pop %v1026
        %v1028 = vsub.f32 %v1025, 1.0
        %v1029 = vsub.f32 %v1027, 1.0
        %v1030 = vsel %vm1020, %v1018, %v1028
        %v1031 = vsel %vm1021, %v1019, %v1029
        %vm1032 = vcmask 261120
        %1033 = vst.msk [vmem:[%s392] sm:$0xff] %vm1032, %v1030
        %1034 = vst.msk [vmem:[%s392 + $0x8] sm:$0xff] %vm1032, %v1031
        %s1035 = sand.u32 %s205, 1
        %s1036 = scalar_lea.sflag [#allocation5], %s1035
        %s1037 = sand.u32 %s205, 1
        %s1038 = smul.addr %s1037, 16
        %s1039 = scalar_lea.vmem [#allocation8], %s1038
        // Predicated region
        $region53: #{tpu_custom_call.1} parent=43 // pred_check
          %p1040 = pneg %p215
        $region54: #{tpu_custom_call.1} parent=43 // pred_check_branch
          %1042 = sbr.rel (%p1040) target = $region56
        $region55: #{tpu_custom_call.1} parent=43 // pred_region
          %s1043 = smul.u32 2, %s31
          %s1045 = ssub.s32 256, 256
          %1046 = vsyncadd %s1036, %s1045
          %s1047 = smul.addr %s30, 2
          %s1048 = sadd.s32 %s1043, %s1047
          %s1049 = smul.addr %s1048, 128
          %s1050 = scalar_lea.hbm %s6, %s1049
          %s1051 = sshll.u32 %s1039, 4
          %s1052 = int_to_ptr.vmem [resolvable:$true] %s1051
          %1057 = dma.vmem_to_hbm [thread:$0]  %s1052, 256, %s1050, %s1036, 128, 128, 8
        $region56: #{tpu_custom_call.1} parent=43 // pred_fallthru
          _
      $region44: #{tpu_custom_call.1} parent=5 // pred_fallthru
        _
      %p1058 = scmp.le.s32.totalorder 2, %s21
      // Predicated region
      $region57: #{tpu_custom_call.1} parent=5 // pred_check
        %p1059 = pneg %p1058
      $region58: #{tpu_custom_call.1} parent=5 // pred_check_branch
        %1061 = sbr.rel (%p1059) target = $region60
      $region59: #{tpu_custom_call.1} parent=5 // pred_region
        %s1062 = ssub.s32 %s21, 2
        // Predicated region
        $region61: #{tpu_custom_call.1} parent=59 // pred_check
          %p1063 = pneg %p221
        $region62: #{tpu_custom_call.1} parent=59 // pred_check_branch
          %1065 = sbr.rel (%p1063) target = $region64
        $region63: #{tpu_custom_call.1} parent=59 // pred_region
          %s1066 = sand.u32 %s206, 1
          %s1067 = scalar_lea.sflag [#allocation5], %s1066
          %s1068 = sand.u32 %s206, 1
          %s1069 = smul.addr %s1068, 16
          %s1070 = scalar_lea.vmem [#allocation8], %s1069
          %1071 = dma.done %s1067, 256
        $region64: #{tpu_custom_call.1} parent=59 // pred_fallthru
          _
      $region60: #{tpu_custom_call.1} parent=5 // pred_fallthru
        _
    $region6: #{tpu_custom_call.1} parent=1 // loop_footer
      %s25 = sadd.s32 1, %s21
    $region7: #{tpu_custom_call.1} parent=1 // loop_footer_branch
      %20 = sbr.rel target = $region3
    $region8: #{tpu_custom_call.1} parent=1 // loop_exit
      _
    %1072 = vsyncpa [#allocation4], 1
    %s1073 = scalar_lea.sflag [#allocation4], 1
    %1074 = vsyncpa %s1073, 1
    %1075 = vsyncpa [#allocation7], 1
    %s1076 = scalar_lea.sflag [#allocation7], 1
    %1077 = vsyncpa %s1076, 1
    %1078 = vsyncpa [#allocation5], 1
    %s1079 = scalar_lea.sflag [#allocation5], 1
    %1080 = vsyncpa %s1079, 1

</llo_original>
